<compile_context>
chip_gen: v6e
topology: v6e:2x2x1
jax: 0.10.0
libtpu: 0.0.40
codegen_flags: <defaults>
</compile_context>

<pallas_src>
import numpy as np
import jax
import jax.numpy as jnp
from jax import lax
from jax.experimental import pallas as pl
from jax.experimental.pallas import tpu as pltpu

# ----------------------- configuration (synthetic "args") -------------------
IMAGE_SIZE = 32        # args.image_size
MULTIMASK  = True      # args.multimask
B          = 2         # batch
C_IN       = 3         # input channels (NCHW)
PATCH      = 4         # patch size for the synthetic image encoder
HE = WE    = IMAGE_SIZE // PATCH   # embedding spatial resolution (8x8)
P          = HE * WE               # number of patches (64)
F          = C_IN * PATCH * PATCH  # flattened patch features (48)
D          = 32                    # embedding dim
K          = 3                     # number of multimask outputs
HL = WL    = HE                    # low-res mask resolution (8x8)
HW_OUT     = IMAGE_SIZE * IMAGE_SIZE   # 1024 -- lane-dense flat output
N_OUT      = 1 if MULTIMASK else K
IOU_LANES  = 128                   # lane-dense padding for the IoU output


# --------------------------- fused Pallas kernel -----------------------------
def fused_forward_kernel(p_ref, we_ref, add_ref, wdec_ref, ioub_ref, up_ref,
                         masks_ref, iou_ref, low_scratch):
    # Single program for the whole batch; all intermediates stay in VMEM/vregs.
    #   p_ref:      (B*P, F)       flattened patches, batch stacked on sublanes
    #   we_ref:     (F, D)         patch-embed weight
    #   add_ref:    (B*P, D)       b_embed + tiled dense_pe + no_mask_embed
    #   wdec_ref:   (2K, D)        concat(mask_tokens, iou_w)
    #   ioub_ref:   (K, 1)         IoU head bias
    #   up_ref:     (P, HW_OUT)    kron(A_h, A_w)^T bilinear matrix, bf16
    #   masks_ref:  (B*N_OUT, HW_OUT)  sigmoid(upsampled masks), lane-dense
    #   iou_ref:    (B*N_OUT, 128)     IoU predictions broadcast across lanes
    #   low_scratch:(B*N_OUT, P)       selected low-res logits

    # --- synthetic image encoder + prompt encoder: one MXU matmul for all B ---
    src = jnp.dot(p_ref[...], we_ref[...],
                  preferred_element_type=jnp.float32) + add_ref[...]    # (B*P, D)

    # --- merged mask-decoder matmul: (2K, D) x (B*P, D)^T -> (2K, B*P) ---
    dec = lax.dot_general(wdec_ref[...], src,
                          dimension_numbers=(((1,), (1,)), ((), ())),
                          preferred_element_type=jnp.float32)           # (2K, B*P)

    # --- per-batch decode / multimask select (static unroll, B=2) ---
    for b in range(B):
        blk = dec[:, b * P:(b + 1) * P]                                 # (2K, P)
        logits = blk[:K]                                                # (K, P)
        # IoU head: iou_w @ mean_p(src_b) == mean over lanes of rows K..2K-1
        iou_col = jnp.mean(blk[K:], axis=1, keepdims=True) + ioub_ref[...]  # (K, 1)

        if MULTIMASK:
            # torch.max(iou, dim=1) with first-occurrence tie-break, vectorized.
            best_val = jnp.max(iou_col, axis=0, keepdims=True)          # (1, 1)
            k_idx = lax.broadcasted_iota(jnp.int32, (K, 1), 0)          # (K, 1)
            is_max = iou_col == best_val
            first_idx = jnp.min(jnp.where(is_max, k_idx, jnp.int32(K)),
                                axis=0, keepdims=True)                  # (1, 1)
            onehot = (k_idx == first_idx).astype(jnp.float32)           # (K, 1)
            low_b = jnp.sum(onehot * logits, axis=0, keepdims=True)     # (1, P)
            iou_b = best_val                                            # (1, 1)
        else:
            low_b = logits                                              # (K, P)
            iou_b = iou_col                                             # (K, 1)

        low_scratch[pl.ds(b * N_OUT, N_OUT), :] = low_b
        # lane-dense IoU writeback (avoids last-dim-1 masked vst)
        iou_ref[pl.ds(b * N_OUT, N_OUT), :] = jnp.broadcast_to(
            iou_b, (N_OUT, IOU_LANES))

    # --- F.interpolate(bilinear, align_corners=False) + sigmoid ---
    # (B*N_OUT, P) bf16 @ (P, HI*WI) bf16 -> f32; single lane-dense 1024-wide store.
    up = jnp.dot(low_scratch[...].astype(jnp.bfloat16), up_ref[...],
                 preferred_element_type=jnp.float32)                    # (B*N_OUT, 1024)
    masks_ref[...] = jax.nn.sigmoid(up)


# --------------------------- glue / wrappers --------------------------------
def _bilinear_matrix_np(out_size, in_size):
    """PyTorch F.interpolate(mode='bilinear', align_corners=False) weights."""
    scale = in_size / out_size
    o = np.arange(out_size)
    src = (o + 0.5) * scale - 0.5
    src = np.maximum(src, 0.0)
    i0 = np.minimum(np.floor(src).astype(np.int64), in_size - 1)
    i1 = np.minimum(i0 + 1, in_size - 1)
    lam = (src - i0).astype(np.float32)
    A = np.zeros((out_size, in_size), np.float32)
    A[o, i0] += (1.0 - lam)
    A[o, i1] += lam
    return A


# vec_rowmajor(A_h @ M @ A_w^T) == kron(A_h, A_w) @ vec_rowmajor(M)
# Kept as a NumPy constant (converted under jit) to avoid import-time device
# placement.  Weights are multiples of 1/64 -> exactly representable in bf16.
_UPSAMPLE_T_NP = np.kron(_bilinear_matrix_np(IMAGE_SIZE, HL),
                         _bilinear_matrix_np(IMAGE_SIZE, WL)).T  # (P, HW_OUT)


def _extract_patches(x_nchw):
    # (B, C, H, W) -> (B*P, F), features ordered (C, ph, pw) like a Conv2d
    # patch-embed weight.  24 KiB of XLA glue fused in front of the kernel.
    b, c, h, w = x_nchw.shape
    x = x_nchw.reshape(b, c, HE, PATCH, WE, PATCH)
    x = jnp.transpose(x, (0, 2, 4, 1, 3, 5))           # (B, HE, WE, C, ph, pw)
    return x.reshape(b * P, F)


def init_params(key):
    ks = jax.random.split(key, 6)
    scale = 0.05
    return {
        "w_embed": scale * jax.random.normal(ks[0], (F, D), jnp.float32),
        "b_embed": scale * jax.random.normal(ks[1], (1, D), jnp.float32),
        "dense_pe": scale * jax.random.normal(ks[2], (P, D), jnp.float32),
        "no_mask_embed": scale * jax.random.normal(ks[3], (1, D), jnp.float32),
        "mask_tokens": scale * jax.random.normal(ks[4], (K, D), jnp.float32),
        "iou_w": scale * jax.random.normal(ks[5], (K, D), jnp.float32),
        "iou_b": jnp.zeros((K, 1), jnp.float32),
    }


def action_value_forward(x_nchw, params):
    patches = _extract_patches(x_nchw)                                  # (B*P, F)

    # Fold positional encoding, no-mask dense embedding and patch-embed bias
    # into a single additive term (one in-kernel add instead of three).
    add_all = (jnp.tile(params["dense_pe"], (B, 1))
               + params["no_mask_embed"] + params["b_embed"])           # (B*P, D)

    # Merge mask-token and IoU-head weights -> single decoder matmul LHS.
    w_dec = jnp.concatenate([params["mask_tokens"], params["iou_w"]], axis=0)  # (2K, D)

    up_bf16 = jnp.asarray(_UPSAMPLE_T_NP, dtype=jnp.bfloat16)           # (P, HW_OUT)

    # sparse prompt embeddings are empty (points=None, boxes=None, masks=None)
    # and never consumed by this forward; not materialized.

    masks_flat, iou_wide = pl.pallas_call(
        fused_forward_kernel,
        out_shape=(
            jax.ShapeDtypeStruct((B * N_OUT, HW_OUT), jnp.float32),
            jax.ShapeDtypeStruct((B * N_OUT, IOU_LANES), jnp.float32),
        ),
        grid=(1,),
        in_specs=[
            pl.BlockSpec((B * P, F), lambda i: (0, 0)),          # patches
            pl.BlockSpec((F, D), lambda i: (0, 0)),              # w_embed
            pl.BlockSpec((B * P, D), lambda i: (0, 0)),          # folded additive term
            pl.BlockSpec((2 * K, D), lambda i: (0, 0)),          # merged decoder weight
            pl.BlockSpec((K, 1), lambda i: (0, 0)),              # iou bias
            pl.BlockSpec((P, HW_OUT), lambda i: (0, 0)),         # upsample matrix (bf16)
        ],
        out_specs=(
            pl.BlockSpec((B * N_OUT, HW_OUT), lambda i: (0, 0)),
            pl.BlockSpec((B * N_OUT, IOU_LANES), lambda i: (0, 0)),
        ),
        scratch_shapes=[pltpu.VMEM((B * N_OUT, P), jnp.float32)],
        compiler_params=pltpu.CompilerParams(
            dimension_semantics=("arbitrary",)),    # single program; no megacore split
    )(patches, params["w_embed"], add_all, w_dec, params["iou_b"], up_bf16)

    masks = masks_flat.reshape(B, N_OUT, IMAGE_SIZE, IMAGE_SIZE)
    iou_predictions = iou_wide[:, 0].reshape(B, N_OUT)
    return masks, iou_predictions


if __name__ == "__main__":
    key = jax.random.PRNGKey(0)
    k_x, k_p = jax.random.split(key)
    x = jax.random.normal(k_x, (B, C_IN, IMAGE_SIZE, IMAGE_SIZE), jnp.float32)
    params = init_params(k_p)

    masks, iou_predictions = jax.jit(action_value_forward)(x, params)
    jax.block_until_ready((masks, iou_predictions))

    assert masks.shape == (B, N_OUT, IMAGE_SIZE, IMAGE_SIZE)
    assert iou_predictions.shape == (B, N_OUT)
    assert bool(jnp.all(jnp.isfinite(masks)))
    assert bool(jnp.all((masks >= 0.0) & (masks <= 1.0)))
    assert bool(jnp.all(jnp.isfinite(iou_predictions)))
    print("KERNEL_OK")
</pallas_src>

<mosaic_0001>
module attributes {stable_mosaic.version = 11 : i64} {
  func.func @fused_forward_kernel(%arg0: i32, %arg1: memref<128x48xf32, #tpu.memory_space<vmem>>, %arg2: memref<48x32xf32, #tpu.memory_space<vmem>>, %arg3: memref<128x32xf32, #tpu.memory_space<vmem>>, %arg4: memref<6x32xf32, #tpu.memory_space<vmem>>, %arg5: memref<3x1xf32, #tpu.memory_space<vmem>>, %arg6: memref<64x1024xbf16, #tpu.memory_space<vmem>>, %arg7: memref<2x1024xf32, #tpu.memory_space<vmem>>, %arg8: memref<2x128xf32, #tpu.memory_space<vmem>>, %arg9: memref<2x64xf32, #tpu.memory_space<vmem>>) attributes {dimension_semantics = [#tpu.dimension_semantics<arbitrary>], iteration_bounds = array<i64: 1>, scalar_prefetch = 0 : i64, scratch_operands = 1 : i64, tpu.core_type = #tpu.core_type<tc>, window_params = [{pipeline_mode = #tpu.pipeline_mode<synchronous>, transform_indices = @transform_0, window_bounds = array<i64: 128, 48>}, {pipeline_mode = #tpu.pipeline_mode<synchronous>, transform_indices = @transform_1, window_bounds = array<i64: 48, 32>}, {pipeline_mode = #tpu.pipeline_mode<synchronous>, transform_indices = @transform_2, window_bounds = array<i64: 128, 32>}, {pipeline_mode = #tpu.pipeline_mode<synchronous>, transform_indices = @transform_3, window_bounds = array<i64: 6, 32>}, {pipeline_mode = #tpu.pipeline_mode<synchronous>, transform_indices = @transform_4, window_bounds = array<i64: 3, 1>}, {pipeline_mode = #tpu.pipeline_mode<synchronous>, transform_indices = @transform_5, window_bounds = array<i64: 64, 1024>}, {pipeline_mode = #tpu.pipeline_mode<synchronous>, transform_indices = @transform_6, window_bounds = array<i64: 2, 1024>}, {pipeline_mode = #tpu.pipeline_mode<synchronous>, transform_indices = @transform_7, window_bounds = array<i64: 2, 128>}]} {
    %c0 = arith.constant 0 : index
    %c0_0 = arith.constant 0 : index
    %0 = vector.load %arg1[%c0, %c0_0] : memref<128x48xf32, #tpu.memory_space<vmem>>, vector<128x48xf32>
    %c0_1 = arith.constant 0 : index
    %c0_2 = arith.constant 0 : index
    %1 = vector.load %arg2[%c0_1, %c0_2] : memref<48x32xf32, #tpu.memory_space<vmem>>, vector<48x32xf32>
    %cst = arith.constant dense<0.000000e+00> : vector<128x32xf32>
    %2 = tpu.matmul %0, %1, %cst {dimension_numbers = #tpu.dot_dimension_numbers<[1], [0], [0], [1], [0, 0, 1, 1], [], []>} : vector<128x48xf32>, vector<48x32xf32>, vector<128x32xf32> -> vector<128x32xf32>
    %c0_3 = arith.constant 0 : index
    %c0_4 = arith.constant 0 : index
    %3 = vector.load %arg3[%c0_3, %c0_4] : memref<128x32xf32, #tpu.memory_space<vmem>>, vector<128x32xf32>
    %4 = arith.addf %2, %3 : vector<128x32xf32>
    %c0_5 = arith.constant 0 : index
    %c0_6 = arith.constant 0 : index
    %5 = vector.load %arg4[%c0_5, %c0_6] : memref<6x32xf32, #tpu.memory_space<vmem>>, vector<6x32xf32>
    %cst_7 = arith.constant dense<0.000000e+00> : vector<6x128xf32>
    %6 = tpu.matmul %5, %4, %cst_7 {dimension_numbers = #tpu.dot_dimension_numbers<[1], [1], [0], [0], [0, 0, 1, 0], [], []>} : vector<6x32xf32>, vector<128x32xf32>, vector<6x128xf32> -> vector<6x128xf32>
    %7 = vector.extract_strided_slice %6 {offsets = [0, 0], sizes = [6, 64], strides = [1, 1]} : vector<6x128xf32> to vector<6x64xf32>
    %8 = vector.extract_strided_slice %7 {offsets = [0, 0], sizes = [3, 64], strides = [1, 1]} : vector<6x64xf32> to vector<3x64xf32>
    %9 = vector.extract_strided_slice %7 {offsets = [3, 0], sizes = [3, 64], strides = [1, 1]} : vector<6x64xf32> to vector<3x64xf32>
    %cst_8 = arith.constant dense<0.000000e+00> : vector<3xf32>
    %10 = vector.multi_reduction <add>, %9, %cst_8 [1] : vector<3x64xf32> to vector<3xf32>
    %11 = vector.shape_cast %10 : vector<3xf32> to vector<3x1xf32>
    %cst_9 = arith.constant 6.400000e+01 : f32
    %12 = vector.broadcast %cst_9 : f32 to vector<3x1xf32>
    %13 = arith.divf %11, %12 : vector<3x1xf32>
    %c0_10 = arith.constant 0 : index
    %c0_11 = arith.constant 0 : index
    %14 = vector.load %arg5[%c0_10, %c0_11] : memref<3x1xf32, #tpu.memory_space<vmem>>, vector<3x1xf32>
    %15 = arith.addf %13, %14 : vector<3x1xf32>
    %cst_12 = arith.constant dense<0xFF800000> : vector<1xf32>
    %16 = vector.multi_reduction <maximumf>, %15, %cst_12 [0] : vector<3x1xf32> to vector<1xf32>
    %17 = vector.shape_cast %16 : vector<1xf32> to vector<1x1xf32>
    %18 = tpu.iota {dimensions = array<i32: 0>} : vector<3x1xi32>
    %19 = vector.broadcast %17 : vector<1x1xf32> to vector<3x1xf32>
    %20 = arith.cmpf oeq, %15, %19 : vector<3x1xf32>
    %c3_i32 = arith.constant 3 : i32
    %21 = vector.broadcast %c3_i32 : i32 to vector<3x1xi32>
    %22 = arith.select %20, %18, %21 : vector<3x1xi1>, vector<3x1xi32>
    %cst_13 = arith.constant dense<2147483647> : vector<1xi32>
    %23 = vector.multi_reduction <minsi>, %22, %cst_13 [0] : vector<3x1xi32> to vector<1xi32>
    %24 = vector.shape_cast %23 : vector<1xi32> to vector<1x1xi32>
    %25 = vector.broadcast %24 : vector<1x1xi32> to vector<3x1xi32>
    %26 = arith.cmpi eq, %18, %25 : vector<3x1xi32>
    %27 = arith.extui %26 : vector<3x1xi1> to vector<3x1xi32>
    %28 = arith.sitofp %27 : vector<3x1xi32> to vector<3x1xf32>
    %29 = vector.broadcast %28 : vector<3x1xf32> to vector<3x64xf32>
    %30 = arith.mulf %29, %8 : vector<3x64xf32>
    %cst_14 = arith.constant dense<0.000000e+00> : vector<64xf32>
    %31 = vector.multi_reduction <add>, %30, %cst_14 [0] : vector<3x64xf32> to vector<64xf32>
    %32 = vector.shape_cast %31 : vector<64xf32> to vector<1x64xf32>
    %c0_15 = arith.constant 0 : index
    %c0_16 = arith.constant 0 : index
    %33 = vector.load %arg9[%c0_15, %c0_16] : memref<2x64xf32, #tpu.memory_space<vmem>>, vector<1x64xf32>
    tpu.vector_store %arg9[%c0_15, %c0_16], %32 {strides = array<i32>} : memref<2x64xf32, #tpu.memory_space<vmem>>, vector<1x64xf32>,
    %34 = vector.shape_cast %17 : vector<1x1xf32> to vector<1x1xf32>
    %35 = vector.broadcast %34 : vector<1x1xf32> to vector<1x128xf32>
    %c0_17 = arith.constant 0 : index
    %c0_18 = arith.constant 0 : index
    %36 = vector.load %arg8[%c0_17, %c0_18] : memref<2x128xf32, #tpu.memory_space<vmem>>, vector<1x128xf32>
    tpu.vector_store %arg8[%c0_17, %c0_18], %35 {strides = array<i32>} : memref<2x128xf32, #tpu.memory_space<vmem>>, vector<1x128xf32>,
    %37 = vector.extract_strided_slice %6 {offsets = [0, 64], sizes = [6, 64], strides = [1, 1]} : vector<6x128xf32> to vector<6x64xf32>
    %38 = vector.extract_strided_slice %37 {offsets = [0, 0], sizes = [3, 64], strides = [1, 1]} : vector<6x64xf32> to vector<3x64xf32>
    %39 = vector.extract_strided_slice %37 {offsets = [3, 0], sizes = [3, 64], strides = [1, 1]} : vector<6x64xf32> to vector<3x64xf32>
    %cst_19 = arith.constant dense<0.000000e+00> : vector<3xf32>
    %40 = vector.multi_reduction <add>, %39, %cst_19 [1] : vector<3x64xf32> to vector<3xf32>
    %41 = vector.shape_cast %40 : vector<3xf32> to vector<3x1xf32>
    %cst_20 = arith.constant 6.400000e+01 : f32
    %42 = vector.broadcast %cst_20 : f32 to vector<3x1xf32>
    %43 = arith.divf %41, %42 : vector<3x1xf32>
    %c0_21 = arith.constant 0 : index
    %c0_22 = arith.constant 0 : index
    %44 = vector.load %arg5[%c0_21, %c0_22] : memref<3x1xf32, #tpu.memory_space<vmem>>, vector<3x1xf32>
    %45 = arith.addf %43, %44 : vector<3x1xf32>
    %cst_23 = arith.constant dense<0xFF800000> : vector<1xf32>
    %46 = vector.multi_reduction <maximumf>, %45, %cst_23 [0] : vector<3x1xf32> to vector<1xf32>
    %47 = vector.shape_cast %46 : vector<1xf32> to vector<1x1xf32>
    %48 = tpu.iota {dimensions = array<i32: 0>} : vector<3x1xi32>
    %49 = vector.broadcast %47 : vector<1x1xf32> to vector<3x1xf32>
    %50 = arith.cmpf oeq, %45, %49 : vector<3x1xf32>
    %c3_i32_24 = arith.constant 3 : i32
    %51 = vector.broadcast %c3_i32_24 : i32 to vector<3x1xi32>
    %52 = arith.select %50, %48, %51 : vector<3x1xi1>, vector<3x1xi32>
    %cst_25 = arith.constant dense<2147483647> : vector<1xi32>
    %53 = vector.multi_reduction <minsi>, %52, %cst_25 [0] : vector<3x1xi32> to vector<1xi32>
    %54 = vector.shape_cast %53 : vector<1xi32> to vector<1x1xi32>
    %55 = vector.broadcast %54 : vector<1x1xi32> to vector<3x1xi32>
    %56 = arith.cmpi eq, %48, %55 : vector<3x1xi32>
    %57 = arith.extui %56 : vector<3x1xi1> to vector<3x1xi32>
    %58 = arith.sitofp %57 : vector<3x1xi32> to vector<3x1xf32>
    %59 = vector.broadcast %58 : vector<3x1xf32> to vector<3x64xf32>
    %60 = arith.mulf %59, %38 : vector<3x64xf32>
    %cst_26 = arith.constant dense<0.000000e+00> : vector<64xf32>
    %61 = vector.multi_reduction <add>, %60, %cst_26 [0] : vector<3x64xf32> to vector<64xf32>
    %62 = vector.shape_cast %61 : vector<64xf32> to vector<1x64xf32>
    %c1 = arith.constant 1 : index
    %c0_27 = arith.constant 0 : index
    %63 = vector.load %arg9[%c1, %c0_27] : memref<2x64xf32, #tpu.memory_space<vmem>>, vector<1x64xf32>
    tpu.vector_store %arg9[%c1, %c0_27], %62 {strides = array<i32>} : memref<2x64xf32, #tpu.memory_space<vmem>>, vector<1x64xf32>,
    %64 = vector.shape_cast %47 : vector<1x1xf32> to vector<1x1xf32>
    %65 = vector.broadcast %64 : vector<1x1xf32> to vector<1x128xf32>
    %c1_28 = arith.constant 1 : index
    %c0_29 = arith.constant 0 : index
    %66 = vector.load %arg8[%c1_28, %c0_29] : memref<2x128xf32, #tpu.memory_space<vmem>>, vector<1x128xf32>
    tpu.vector_store %arg8[%c1_28, %c0_29], %65 {strides = array<i32>} : memref<2x128xf32, #tpu.memory_space<vmem>>, vector<1x128xf32>,
    %c0_30 = arith.constant 0 : index
    %c0_31 = arith.constant 0 : index
    %67 = vector.load %arg9[%c0_30, %c0_31] : memref<2x64xf32, #tpu.memory_space<vmem>>, vector<2x64xf32>
    %68 = arith.truncf %67 : vector<2x64xf32> to vector<2x64xbf16>
    %c0_32 = arith.constant 0 : index
    %c0_33 = arith.constant 0 : index
    %69 = vector.load %arg6[%c0_32, %c0_33] : memref<64x1024xbf16, #tpu.memory_space<vmem>>, vector<64x1024xbf16>
    %cst_34 = arith.constant dense<0.000000e+00> : vector<2x1024xf32>
    %70 = tpu.matmul %68, %69, %cst_34 {dimension_numbers = #tpu.dot_dimension_numbers<[1], [0], [0], [1], [0, 0, 1, 1], [], []>} : vector<2x64xbf16>, vector<64x1024xbf16>, vector<2x1024xf32> -> vector<2x1024xf32>
    %71 = arith.negf %70 : vector<2x1024xf32>
    %72 = math.exp %71 : vector<2x1024xf32>
    %cst_35 = arith.constant 1.000000e+00 : f32
    %73 = vector.broadcast %cst_35 : f32 to vector<2x1024xf32>
    %74 = arith.addf %73, %72 : vector<2x1024xf32>
    %75 = arith.divf %73, %74 : vector<2x1024xf32>
    %c0_36 = arith.constant 0 : index
    %c0_37 = arith.constant 0 : index
    %76 = vector.load %arg7[%c0_36, %c0_37] : memref<2x1024xf32, #tpu.memory_space<vmem>>, vector<2x1024xf32>
    tpu.vector_store %arg7[%c0_36, %c0_37], %75 {strides = array<i32>} : memref<2x1024xf32, #tpu.memory_space<vmem>>, vector<2x1024xf32>,
    return
  }
  func.func @transform_0(%arg0: i32) -> (i32, i32) {
    %c0_i32 = arith.constant 0 : i32
    %c0_i32_0 = arith.constant 0 : i32
    %c0_i32_1 = arith.constant 0 : i32
    return %c0_i32, %c0_i32_0 : i32, i32
  }
  func.func @transform_1(%arg0: i32) -> (i32, i32) {
    %c0_i32 = arith.constant 0 : i32
    %c0_i32_0 = arith.constant 0 : i32
    %c0_i32_1 = arith.constant 0 : i32
    return %c0_i32, %c0_i32_0 : i32, i32
  }
  func.func @transform_2(%arg0: i32) -> (i32, i32) {
    %c0_i32 = arith.constant 0 : i32
    %c0_i32_0 = arith.constant 0 : i32
    %c0_i32_1 = arith.constant 0 : i32
    return %c0_i32, %c0_i32_0 : i32, i32
  }
  func.func @transform_3(%arg0: i32) -> (i32, i32) {
    %c0_i32 = arith.constant 0 : i32
    %c0_i32_0 = arith.constant 0 : i32
    %c0_i32_1 = arith.constant 0 : i32
    return %c0_i32, %c0_i32_0 : i32, i32
  }
  func.func @transform_4(%arg0: i32) -> (i32, i32) {
    %c0_i32 = arith.constant 0 : i32
    %c0_i32_0 = arith.constant 0 : i32
    %c0_i32_1 = arith.constant 0 : i32
    return %c0_i32, %c0_i32_0 : i32, i32
  }
  func.func @transform_5(%arg0: i32) -> (i32, i32) {
    %c0_i32 = arith.constant 0 : i32
    %c0_i32_0 = arith.constant 0 : i32
    %c0_i32_1 = arith.constant 0 : i32
    return %c0_i32, %c0_i32_0 : i32, i32
  }
  func.func @transform_6(%arg0: i32) -> (i32, i32) {
    %c0_i32 = arith.constant 0 : i32
    %c0_i32_0 = arith.constant 0 : i32
    %c0_i32_1 = arith.constant 0 : i32
    return %c0_i32, %c0_i32_0 : i32, i32
  }
  func.func @transform_7(%arg0: i32) -> (i32, i32) {
    %c0_i32 = arith.constant 0 : i32
    %c0_i32_0 = arith.constant 0 : i32
    %c0_i32_1 = arith.constant 0 : i32
    return %c0_i32, %c0_i32_0 : i32, i32
  }
}

</mosaic_0001>

<llo_original>
// kernel: action_value_forward.1
$region0: #{action_value_forward.1}
  #allocation0 [shape = 'u32[]', space=smem, size = 0x4, offset = 0x4, fixed_abs, tag = 'smem constant byte address 0x4 - core index']
  #allocation1 [shape = 'u32[144,128]{1,0:T(1,128)}', space=vmem, size = 0x12000, scoped, tag = 'internal scratch']
  #allocation2 [shape = 'f32[2,64]{1,0:T(2,128)}', space=vmem, size = 0x400, scoped, tag = 'scratch operand']
  %s0 = inlined_call_operand.vmem [shape: f32[128,48], index: 0, kind: input, shape index: {}]
  %s1 = inlined_call_operand.vmem [shape: f32[48,32], index: 1, kind: input, shape index: {}]
  %s2 = inlined_call_operand.vmem [shape: f32[128,32], index: 2, kind: input, shape index: {}]
  %s3 = inlined_call_operand.vmem [shape: f32[6,32], index: 3, kind: input, shape index: {}]
  %s4 = inlined_call_operand.vmem [shape: f32[3,1], index: 4, kind: input, shape index: {}]
  %s5 = inlined_call_operand.vmem [shape: bf16[64,1024], index: 5, kind: input, shape index: {}]
  %s6 = inlined_call_operand.vmem [shape: f32[2,1024], index: 6, kind: output, shape index: {0}]
  %s7 = inlined_call_operand.vmem [shape: f32[2,128], index: 7, kind: output, shape index: {1}]
  %8 = xla_tuple %s6, %s7
  %s9 = sld [smem:[#allocation0]]
  $region42: #{action_value_forward.1} parent=0
    _
  %s11 = ssub.s32 1, %s9
  %s12 = scalar_select 0, %s11, %s9
  // Predicated region
  $region2: #{action_value_forward.1} parent=0 // pred_check
    _
  $region3: #{action_value_forward.1} parent=0 // pred_check_branch
    %14 = sbr.rel (0) target = $region5
  $region4: #{action_value_forward.1} parent=0 // pred_region
    _
  $region5: #{action_value_forward.1} parent=0 // pred_fallthru
    _
  // Predicated region
  $region6: #{action_value_forward.1} parent=0 // pred_check
    _
  $region7: #{action_value_forward.1} parent=0 // pred_check_branch
    %16 = sbr.rel (0) target = $region9
  $region8: #{action_value_forward.1} parent=0 // pred_region
    _
  $region9: #{action_value_forward.1} parent=0 // pred_fallthru
    _
  // Predicated region
  $region10: #{action_value_forward.1} parent=0 // pred_check
    _
  $region11: #{action_value_forward.1} parent=0 // pred_check_branch
    %18 = sbr.rel (0) target = $region13
  $region12: #{action_value_forward.1} parent=0 // pred_region
    _
  $region13: #{action_value_forward.1} parent=0 // pred_fallthru
    _
  // Predicated region
  $region14: #{action_value_forward.1} parent=0 // pred_check
    _
  $region15: #{action_value_forward.1} parent=0 // pred_check_branch
    %20 = sbr.rel (0) target = $region17
  $region16: #{action_value_forward.1} parent=0 // pred_region
    _
  $region17: #{action_value_forward.1} parent=0 // pred_fallthru
    _
  // Predicated region
  $region18: #{action_value_forward.1} parent=0 // pred_check
    _
  $region19: #{action_value_forward.1} parent=0 // pred_check_branch
    %22 = sbr.rel (0) target = $region21
  $region20: #{action_value_forward.1} parent=0 // pred_region
    _
  $region21: #{action_value_forward.1} parent=0 // pred_fallthru
    _
  // Predicated region
  $region22: #{action_value_forward.1} parent=0 // pred_check
    _
  $region23: #{action_value_forward.1} parent=0 // pred_check_branch
    %24 = sbr.rel (0) target = $region25
  $region24: #{action_value_forward.1} parent=0 // pred_region
    _
  $region25: #{action_value_forward.1} parent=0 // pred_fallthru
    _
  %v26 = vld [vmem:[%s0] sm:$0xff]
  %v27 = vld [vmem:[%s0 + $0x8] sm:$0xff]
  %v28 = vld [vmem:[%s0 + $0x10] sm:$0xff]
  %v29 = vld [vmem:[%s0 + $0x18] sm:$0xff]
  %v30 = vld [vmem:[%s0 + $0x20] sm:$0xff]
  %v31 = vld [vmem:[%s0 + $0x28] sm:$0xff]
  %v32 = vld [vmem:[%s0 + $0x30] sm:$0xff]
  %v33 = vld [vmem:[%s0 + $0x38] sm:$0xff]
  %v34 = vld [vmem:[%s0 + $0x40] sm:$0xff]
  %v35 = vld [vmem:[%s0 + $0x48] sm:$0xff]
  %v36 = vld [vmem:[%s0 + $0x50] sm:$0xff]
  %v37 = vld [vmem:[%s0 + $0x58] sm:$0xff]
  %v38 = vld [vmem:[%s0 + $0x60] sm:$0xff]
  %v39 = vld [vmem:[%s0 + $0x68] sm:$0xff]
  %v40 = vld [vmem:[%s0 + $0x70] sm:$0xff]
  %v41 = vld [vmem:[%s0 + $0x78] sm:$0xff]
  %v42 = vld [vmem:[%s1] sm:$0xff]
  %v43 = vld [vmem:[%s1 + $0x8] sm:$0xff]
  %v44 = vld [vmem:[%s1 + $0x10] sm:$0xff]
  %v45 = vld [vmem:[%s1 + $0x18] sm:$0xff]
  %v46 = vld [vmem:[%s1 + $0x20] sm:$0xff]
  %v47 = vld [vmem:[%s1 + $0x28] sm:$0xff]
  %v48 = vld [vmem:[%s2] sm:$0xff]
  %v49 = vld [vmem:[%s2 + $0x8] sm:$0xff]
  %v50 = vld [vmem:[%s2 + $0x10] sm:$0xff]
  %v51 = vld [vmem:[%s2 + $0x18] sm:$0xff]
  %v52 = vld [vmem:[%s2 + $0x20] sm:$0xff]
  %v53 = vld [vmem:[%s2 + $0x28] sm:$0xff]
  %v54 = vld [vmem:[%s2 + $0x30] sm:$0xff]
  %v55 = vld [vmem:[%s2 + $0x38] sm:$0xff]
  %v56 = vld [vmem:[%s2 + $0x40] sm:$0xff]
  %v57 = vld [vmem:[%s2 + $0x48] sm:$0xff]
  %v58 = vld [vmem:[%s2 + $0x50] sm:$0xff]
  %v59 = vld [vmem:[%s2 + $0x58] sm:$0xff]
  %v60 = vld [vmem:[%s2 + $0x60] sm:$0xff]
  %v61 = vld [vmem:[%s2 + $0x68] sm:$0xff]
  %v62 = vld [vmem:[%s2 + $0x70] sm:$0xff]
  %v63 = vld [vmem:[%s2 + $0x78] sm:$0xff]
  %vm64 = vcmask 392192
  %v66 = vsel %vm64, %v26, 0
  %v69 = vsel %vm64, %v27, 0
  %v72 = vsel %vm64, %v28, 0
  %v75 = vsel %vm64, %v29, 0
  %v78 = vsel %vm64, %v30, 0
  %v81 = vsel %vm64, %v31, 0
  %v84 = vsel %vm64, %v32, 0
  %v87 = vsel %vm64, %v33, 0
  %v90 = vsel %vm64, %v34, 0
  %v93 = vsel %vm64, %v35, 0
  %v96 = vsel %vm64, %v36, 0
  %v99 = vsel %vm64, %v37, 0
  %v102 = vsel %vm64, %v38, 0
  %v105 = vsel %vm64, %v39, 0
  %v108 = vsel %vm64, %v40, 0
  %v111 = vsel %vm64, %v41, 0
  %113 = vmatprep.subr.mxu0 0.0
  %114 = vmatpush1.msra.mxu0 0.0
  %115 = vmatprep.subr.mxu0 0.0
  %116 = vmatpush1.msra.mxu0 0.0
  %117 = vmatprep.subr.mxu0 0.0
  %118 = vmatpush1.msra.mxu0 0.0
  %119 = vmatprep.subr.mxu0 0.0
  %120 = vmatpush1.msra.mxu0 0.0
  %121 = vmatprep.subr.mxu0 0.0
  %122 = vmatpush1.msra.mxu0 0.0
  %123 = vmatprep.subr.mxu0 0.0
  %124 = vmatpush1.msra.mxu0 0.0
  %125 = vmatprep.subr.mxu0 0.0
  %126 = vmatpush1.msra.mxu0 0.0
  %127 = vmatprep.subr.mxu0 0.0
  %128 = vmatpush1.msra.mxu0 0.0
  %129 = vmatprep.subr.mxu0 0.0
  %130 = vmatpush1.msra.mxu0 0.0
  %131 = vmatprep.subr.mxu0 0.0
  %132 = vmatpush1.msra.mxu0 0.0
  %133 = vmatprep.subr.mxu0 0.0
  %134 = vmatpush1.msra.mxu0 %v47
  %135 = vmatprep.subr.mxu0 0.0
  %136 = vmatpush1.msra.mxu0 %v46
  %137 = vmatprep.subr.mxu0 0.0
  %138 = vmatpush1.msra.mxu0 %v45
  %139 = vmatprep.subr.mxu0 0.0
  %140 = vmatpush1.msra.mxu0 %v44
  %141 = vmatprep.subr.mxu0 0.0
  %142 = vmatpush1.msra.mxu0 %v43
  %143 = vmatprep.subr.mxu0 0.0
  %144 = vmatpush1.msra.mxu0 %v42
  %145 = vmatprep.subr.mxu0 0.0
  %146 = vmatpush2.msra.mxu0 0.0
  %147 = vmatprep.subr.mxu0 0.0
  %148 = vmatpush2.msra.mxu0 0.0
  %149 = vmatprep.subr.mxu0 0.0
  %150 = vmatpush2.msra.mxu0 0.0
  %151 = vmatprep.subr.mxu0 0.0
  %152 = vmatpush2.msra.mxu0 0.0
  %153 = vmatprep.subr.mxu0 0.0
  %154 = vmatpush2.msra.mxu0 0.0
  %155 = vmatprep.subr.mxu0 0.0
  %156 = vmatpush2.msra.mxu0 0.0
  %157 = vmatprep.subr.mxu0 0.0
  %158 = vmatpush2.msra.mxu0 0.0
  %159 = vmatprep.subr.mxu0 0.0
  %160 = vmatpush2.msra.mxu0 0.0
  %161 = vmatprep.subr.mxu0 0.0
  %162 = vmatpush2.msra.mxu0 0.0
  %163 = vmatprep.subr.mxu0 0.0
  %164 = vmatpush2.msra.mxu0 0.0
  %165 = vmatprep.subr.mxu0 0.0
  %166 = vmatpush2.msra.mxu0 0.0
  %167 = vmatprep.subr.mxu0 0.0
  %168 = vmatpush2.msra.mxu0 0.0
  %169 = vmatprep.subr.mxu0 0.0
  %170 = vmatpush2.msra.mxu0 0.0
  %171 = vmatprep.subr.mxu0 0.0
  %172 = vmatpush2.msra.mxu0 0.0
  %173 = vmatprep.subr.mxu0 0.0
  %174 = vmatpush2.msra.mxu0 0.0
  %175 = vmatprep.subr.mxu0 0.0
  %176 = vmatpush2.msra.mxu0 0.0
  %177 = vmatprep.mubr.f32.mxu0 0.0
  %178 = vmatmul.mubr.f32.gmra.mxu0 %v66
  %v179 = vpop.f32.mrf.mxu0
  %v180 = vadd.f32 %v48, %v179
  %v181 = vpop.f32.mrf.mxu0
  %182 = vmatprep.mubr.f32.mxu0 0.0
  %183 = vmatmul.mubr.f32.gmra.mxu0 %v69
  %v184 = vpop.f32.mrf.mxu0
  %v185 = vadd.f32 %v49, %v184
  %v186 = vpop.f32.mrf.mxu0
  %187 = vmatprep.mubr.f32.mxu0 0.0
  %188 = vmatmul.mubr.f32.gmra.mxu0 %v72
  %v189 = vpop.f32.mrf.mxu0
  %v190 = vadd.f32 %v50, %v189
  %v191 = vpop.f32.mrf.mxu0
  %192 = vmatprep.mubr.f32.mxu0 0.0
  %193 = vmatmul.mubr.f32.gmra.mxu0 %v75
  %v194 = vpop.f32.mrf.mxu0
  %v195 = vadd.f32 %v51, %v194
  %v196 = vpop.f32.mrf.mxu0
  %197 = vmatprep.mubr.f32.mxu0 0.0
  %198 = vmatmul.mubr.f32.gmra.mxu0 %v78
  %v199 = vpop.f32.mrf.mxu0
  %v200 = vadd.f32 %v52, %v199
  %v201 = vpop.f32.mrf.mxu0
  %202 = vmatprep.mubr.f32.mxu0 0.0
  %203 = vmatmul.mubr.f32.gmra.mxu0 %v81
  %v204 = vpop.f32.mrf.mxu0
  %v205 = vadd.f32 %v53, %v204
  %v206 = vpop.f32.mrf.mxu0
  %207 = vmatprep.mubr.f32.mxu0 0.0
  %208 = vmatmul.mubr.f32.gmra.mxu0 %v84
  %v209 = vpop.f32.mrf.mxu0
  %v210 = vadd.f32 %v54, %v209
  %v211 = vpop.f32.mrf.mxu0
  %212 = vmatprep.mubr.f32.mxu0 0.0
  %213 = vmatmul.mubr.f32.gmra.mxu0 %v87
  %v214 = vpop.f32.mrf.mxu0
  %v215 = vadd.f32 %v55, %v214
  %v216 = vpop.f32.mrf.mxu0
  %217 = vmatprep.mubr.f32.mxu0 0.0
  %218 = vmatmul.mubr.f32.gmra.mxu0 %v90
  %v219 = vpop.f32.mrf.mxu0
  %v220 = vadd.f32 %v56, %v219
  %v221 = vpop.f32.mrf.mxu0
  %222 = vmatprep.mubr.f32.mxu0 0.0
  %223 = vmatmul.mubr.f32.gmra.mxu0 %v93
  %v224 = vpop.f32.mrf.mxu0
  %v225 = vadd.f32 %v57, %v224
  %v226 = vpop.f32.mrf.mxu0
  %227 = vmatprep.mubr.f32.mxu0 0.0
  %228 = vmatmul.mubr.f32.gmra.mxu0 %v96
  %v229 = vpop.f32.mrf.mxu0
  %v230 = vadd.f32 %v58, %v229
  %v231 = vpop.f32.mrf.mxu0
  %232 = vmatprep.mubr.f32.mxu0 0.0
  %233 = vmatmul.mubr.f32.gmra.mxu0 %v99
  %v234 = vpop.f32.mrf.mxu0
  %v235 = vadd.f32 %v59, %v234
  %v236 = vpop.f32.mrf.mxu0
  %237 = vmatprep.mubr.f32.mxu0 0.0
  %238 = vmatmul.mubr.f32.gmra.mxu0 %v102
  %v239 = vpop.f32.mrf.mxu0
  %v240 = vadd.f32 %v60, %v239
  %v241 = vpop.f32.mrf.mxu0
  %242 = vmatprep.mubr.f32.mxu0 0.0
  %243 = vmatmul.mubr.f32.gmra.mxu0 %v105
  %v244 = vpop.f32.mrf.mxu0
  %v245 = vadd.f32 %v61, %v244
  %v246 = vpop.f32.mrf.mxu0
  %247 = vmatprep.mubr.f32.mxu0 0.0
  %248 = vmatmul.mubr.f32.gmra.mxu0 %v108
  %v249 = vpop.f32.mrf.mxu0
  %v250 = vadd.f32 %v62, %v249
  %v251 = vpop.f32.mrf.mxu0
  %252 = vmatprep.mubr.f32.mxu0 0.0
  %253 = vmatmul.mubr.f32.gmra.mxu0 %v111
  %v254 = vpop.f32.mrf.mxu0
  %v255 = vadd.f32 %v63, %v254
  %v256 = vpop.f32.mrf.mxu0
  %257 = vdwg.mxu0
  %v258 = vld [vmem:[%s3] sm:$0x3f]
  %vm259 = vcmask 261120
  %v261 = vsel %vm259, %v258, 0
  %v264 = vsel %vm259, %v180, 0
  %v267 = vsel %vm259, %v185, 0
  %v270 = vsel %vm259, %v190, 0
  %v273 = vsel %vm259, %v195, 0
  %v276 = vsel %vm259, %v200, 0
  %v279 = vsel %vm259, %v205, 0
  %v282 = vsel %vm259, %v210, 0
  %v285 = vsel %vm259, %v215, 0
  %v288 = vsel %vm259, %v220, 0
  %v291 = vsel %vm259, %v225, 0
  %v294 = vsel %vm259, %v230, 0
  %v297 = vsel %vm259, %v235, 0
  %v300 = vsel %vm259, %v240, 0
  %v303 = vsel %vm259, %v245, 0
  %v306 = vsel %vm259, %v250, 0
  %v309 = vsel %vm259, %v255, 0
  %311 = vmatprep.subr.mxu0 0.0
  %312 = vmatpush1.xpose.msra.mxu0 %v309
  %313 = vmatprep.subr.mxu0 0.0
  %314 = vmatpush1.xpose.msra.mxu0 %v306
  %315 = vmatprep.subr.mxu0 0.0
  %316 = vmatpush1.xpose.msra.mxu0 %v303
  %317 = vmatprep.subr.mxu0 0.0
  %318 = vmatpush1.xpose.msra.mxu0 %v300
  %319 = vmatprep.subr.mxu0 0.0
  %320 = vmatpush1.xpose.msra.mxu0 %v297
  %321 = vmatprep.subr.mxu0 0.0
  %322 = vmatpush1.xpose.msra.mxu0 %v294
  %323 = vmatprep.subr.mxu0 0.0
  %324 = vmatpush1.xpose.msra.mxu0 %v291
  %325 = vmatprep.subr.mxu0 0.0
  %326 = vmatpush1.xpose.msra.mxu0 %v288
  %327 = vmatprep.subr.mxu0 0.0
  %328 = vmatpush1.xpose.msra.mxu0 %v285
  %329 = vmatprep.subr.mxu0 0.0
  %330 = vmatpush1.xpose.msra.mxu0 %v282
  %331 = vmatprep.subr.mxu0 0.0
  %332 = vmatpush1.xpose.msra.mxu0 %v279
  %333 = vmatprep.subr.mxu0 0.0
  %334 = vmatpush1.xpose.msra.mxu0 %v276
  %335 = vmatprep.subr.mxu0 0.0
  %336 = vmatpush1.xpose.msra.mxu0 %v273
  %337 = vmatprep.subr.mxu0 0.0
  %338 = vmatpush1.xpose.msra.mxu0 %v270
  %339 = vmatprep.subr.mxu0 0.0
  %340 = vmatpush1.xpose.msra.mxu0 %v267
  %341 = vmatprep.subr.mxu0 0.0
  %342 = vmatpush1.xpose.msra.mxu0 %v264
  %343 = vmatprep.subr.mxu0 0.0
  %344 = vmatpush2.xpose.msra.mxu0 0.0
  %345 = vmatprep.subr.mxu0 0.0
  %346 = vmatpush2.xpose.msra.mxu0 0.0
  %347 = vmatprep.subr.mxu0 0.0
  %348 = vmatpush2.xpose.msra.mxu0 0.0
  %349 = vmatprep.subr.mxu0 0.0
  %350 = vmatpush2.xpose.msra.mxu0 0.0
  %351 = vmatprep.subr.mxu0 0.0
  %352 = vmatpush2.xpose.msra.mxu0 0.0
  %353 = vmatprep.subr.mxu0 0.0
  %354 = vmatpush2.xpose.msra.mxu0 0.0
  %355 = vmatprep.subr.mxu0 0.0
  %356 = vmatpush2.xpose.msra.mxu0 0.0
  %357 = vmatprep.subr.mxu0 0.0
  %358 = vmatpush2.xpose.msra.mxu0 0.0
  %359 = vmatprep.subr.mxu0 0.0
  %360 = vmatpush2.xpose.msra.mxu0 0.0
  %361 = vmatprep.subr.mxu0 0.0
  %362 = vmatpush2.xpose.msra.mxu0 0.0
  %363 = vmatprep.subr.mxu0 0.0
  %364 = vmatpush2.xpose.msra.mxu0 0.0
  %365 = vmatprep.subr.mxu0 0.0
  %366 = vmatpush2.xpose.msra.mxu0 0.0
  %367 = vmatprep.subr.mxu0 0.0
  %368 = vmatpush2.xpose.msra.mxu0 0.0
  %369 = vmatprep.subr.mxu0 0.0
  %370 = vmatpush2.xpose.msra.mxu0 0.0
  %371 = vmatprep.subr.mxu0 0.0
  %372 = vmatpush2.xpose.msra.mxu0 0.0
  %373 = vmatprep.subr.mxu0 0.0
  %374 = vmatpush2.xpose.msra.mxu0 0.0
  %375 = vmatprep.mubr.f32.mxu0 0.0
  %376 = vmatmul.mubr.f32.gmra.mxu0 %v261
  %v377 = vpop.f32.mrf.mxu0
  %v378 = vadd.f32 0.0, %v377
  %v379 = vpop.f32.mrf.mxu0
  %380 = vdwg.mxu0
  %vm381 = vcmask 521219
  %v382 = vsel %vm381, %v378, 0.0
  %383 = vadd.xlane.f32.xlu0 %v382
  %v384 = vpop.xlane.xlu0 %383
  %v385 = vrcp.pop 64.0
  %v386 = vmul.f32 %v384, %v385
  %v387 = vld [vmem:[%s4] sm:$0x7]
  %v389 = vrot.slane %v387, 5
  %v391 = vadd.f32 %v386, %v389
  %vm392 = vcmask 5123
  %v393 = vsel %vm392, %v391, -inf
  %v394 = vrot.slane %v393, 4
  %v395 = vmax.f32 %v393, %v394
  %v396 = vrot.slane %v395, 2
  %v397 = vmax.f32 %v395, %v396
  %v398 = vrot.slane %v397, 1
  %v399 = vmax.f32 %v397, %v398
  %v400 = vlaneseq
  %v401 = vshrl.u32 %v400, 7
  %vm402 = vcmp.eq.f32.partialorder %v391, %v399
  %v403 = vrot.slane %v401, 5
  %v404 = vsel %vm402, %v403, 3
  %v405 = vsel %vm392, %v404, 2147483647
  %v406 = vrot.slane %v405, 4
  %vm407 = vcmp.lt.s32.totalorder %v405, %v406
  %v408 = vsel %vm407, %v405, %v406
  %v409 = vrot.slane %v408, 2
  %vm410 = vcmp.lt.s32.totalorder %v408, %v409
  %v411 = vsel %vm410, %v408, %v409
  %v412 = vrot.slane %v411, 1
  %vm413 = vcmp.lt.s32.totalorder %v411, %v412
  %v414 = vsel %vm413, %v411, %v412
  %vm415 = vcmp.eq.s32.totalorder %v401, %v414
  %v416 = vsel %vm415, 1, 0
  %v417 = vcvt.s32.f32 %v416
  %419 = vset.pattern.permute.xlu0 0
  %420 = vperm.xlu0 %419, %v417
  %v421 = vpop.permute.xlu0 %420
  %v423 = vmul.f32 %v421, %v378
  %vm424 = vcmask 518144
  %v425 = vsel %vm424, %v423, 0.0
  %v426 = vrot.slane %v425, 4
  %v427 = vadd.f32 %v425, %v426
  %v428 = vrot.slane %v427, 2
  %v429 = vadd.f32 %v427, %v428
  %v430 = vrot.slane %v429, 1
  %v431 = vadd.f32 %v429, %v430
  %vm432 = vcmask 516096
  %433 = vst.msk [vmem:[#allocation2] sm:$0x1] %vm432, %v431
  %435 = vset.pattern.permute.xlu0 0
  %436 = vperm.xlu0 %435, %v399
  %v437 = vpop.permute.xlu0 %436
  %439 = vst [vmem:[%s7] sm:$0x1] %v437
  %441 = vrot.lane.b32.xlu0 %v378, 64
  %v442 = vpop.permute.xlu0 %441
  %v444 = vsel %vm381, %v442, 0.0
  %445 = vadd.xlane.f32.xlu0 %v444
  %v446 = vpop.xlane.xlu0 %445
  %v447 = vmul.f32 %v446, %v385
  %v448 = vld [vmem:[%s4] sm:$0x7]
  %v450 = vrot.slane %v448, 5
  %v452 = vadd.f32 %v447, %v450
  %v453 = vsel %vm392, %v452, -inf
  %v454 = vrot.slane %v453, 4
  %v455 = vmax.f32 %v453, %v454
  %v456 = vrot.slane %v455, 2
  %v457 = vmax.f32 %v455, %v456
  %v458 = vrot.slane %v457, 1
  %v459 = vmax.f32 %v457, %v458
  %vm460 = vcmp.eq.f32.partialorder %v452, %v459
  %v461 = vsel %vm460, %v403, 3
  %v462 = vsel %vm392, %v461, 2147483647
  %v463 = vrot.slane %v462, 4
  %vm464 = vcmp.lt.s32.totalorder %v462, %v463
  %v465 = vsel %vm464, %v462, %v463
  %v466 = vrot.slane %v465, 2
  %vm467 = vcmp.lt.s32.totalorder %v465, %v466
  %v468 = vsel %vm467, %v465, %v466
  %v469 = vrot.slane %v468, 1
  %vm470 = vcmp.lt.s32.totalorder %v468, %v469
  %v471 = vsel %vm470, %v468, %v469
  %vm472 = vcmp.eq.s32.totalorder %v401, %v471
  %v473 = vsel %vm472, 1, 0
  %v474 = vcvt.s32.f32 %v473
  %476 = vset.pattern.permute.xlu0 0
  %477 = vperm.xlu0 %476, %v474
  %v478 = vpop.permute.xlu0 %477
  %v480 = vmul.f32 %v478, %v378
  %vm481 = vcmask 1042944
  %v482 = vsel %vm481, %v480, 0.0
  %v483 = vrot.slane %v482, 4
  %v484 = vadd.f32 %v482, %v483
  %v485 = vrot.slane %v484, 2
  %v486 = vadd.f32 %v484, %v485
  %v487 = vrot.slane %v486, 1
  %v488 = vadd.f32 %v486, %v487
  %490 = vrot.lane.b32.xlu0 %v488, 64
  %v491 = vpop.permute.xlu0 %490
  %493 = vst.msk [vmem:[#allocation2 + $0x1] sm:$0x1] %vm432, %v491
  %495 = vset.pattern.permute.xlu0 0
  %496 = vperm.xlu0 %495, %v459
  %v497 = vpop.permute.xlu0 %496
  %499 = vst [vmem:[%s7 + $0x1] sm:$0x1] %v497
  %v500 = vld [vmem:[#allocation2] sm:$0x3]
  %v501 = vpack.c.bf16 %v500, %v500
  %v502 = vld [vmem:[%s5] sm:$0xff]
  %v503 = vld [vmem:[%s5 + $0x8] sm:$0xff]
  %v504 = vld [vmem:[%s5 + $0x10] sm:$0xff]
  %v505 = vld [vmem:[%s5 + $0x18] sm:$0xff]
  %v506 = vld [vmem:[%s5 + $0x20] sm:$0xff]
  %v507 = vld [vmem:[%s5 + $0x28] sm:$0xff]
  %v508 = vld [vmem:[%s5 + $0x30] sm:$0xff]
  %v509 = vld [vmem:[%s5 + $0x38] sm:$0xff]
  %v510 = vld [vmem:[%s5 + $0x40] sm:$0xff]
  %v511 = vld [vmem:[%s5 + $0x48] sm:$0xff]
  %v512 = vld [vmem:[%s5 + $0x50] sm:$0xff]
  %v513 = vld [vmem:[%s5 + $0x58] sm:$0xff]
  %v514 = vld [vmem:[%s5 + $0x60] sm:$0xff]
  %v515 = vld [vmem:[%s5 + $0x68] sm:$0xff]
  %v516 = vld [vmem:[%s5 + $0x70] sm:$0xff]
  %v517 = vld [vmem:[%s5 + $0x78] sm:$0xff]
  %v518 = vld [vmem:[%s5 + $0x80] sm:$0xff]
  %v519 = vld [vmem:[%s5 + $0x88] sm:$0xff]
  %v520 = vld [vmem:[%s5 + $0x90] sm:$0xff]
  %v521 = vld [vmem:[%s5 + $0x98] sm:$0xff]
  %v522 = vld [vmem:[%s5 + $0xa0] sm:$0xff]
  %v523 = vld [vmem:[%s5 + $0xa8] sm:$0xff]
  %v524 = vld [vmem:[%s5 + $0xb0] sm:$0xff]
  %v525 = vld [vmem:[%s5 + $0xb8] sm:$0xff]
  %v526 = vld [vmem:[%s5 + $0xc0] sm:$0xff]
  %v527 = vld [vmem:[%s5 + $0xc8] sm:$0xff]
  %v528 = vld [vmem:[%s5 + $0xd0] sm:$0xff]
  %v529 = vld [vmem:[%s5 + $0xd8] sm:$0xff]
  %v530 = vld [vmem:[%s5 + $0xe0] sm:$0xff]
  %v531 = vld [vmem:[%s5 + $0xe8] sm:$0xff]
  %v532 = vld [vmem:[%s5 + $0xf0] sm:$0xff]
  %v533 = vld [vmem:[%s5 + $0xf8] sm:$0xff]
  %v566 = vunpack.c.l.b16 %v502
  %v567 = vunpack.c.h.b16 %v502
  %v568 = vunpack.c.l.b16 %v503
  %v569 = vunpack.c.h.b16 %v503
  %v570 = vunpack.c.l.b16 %v504
  %v571 = vunpack.c.h.b16 %v504
  %v572 = vunpack.c.l.b16 %v505
  %v573 = vunpack.c.h.b16 %v505
  %v574 = vunpack.c.l.b16 %v506
  %v575 = vunpack.c.h.b16 %v506
  %v576 = vunpack.c.l.b16 %v507
  %v577 = vunpack.c.h.b16 %v507
  %v578 = vunpack.c.l.b16 %v508
  %v579 = vunpack.c.h.b16 %v508
  %v580 = vunpack.c.l.b16 %v509
  %v581 = vunpack.c.h.b16 %v509
  %v582 = vunpack.c.l.b16 %v510
  %v583 = vunpack.c.h.b16 %v510
  %v584 = vunpack.c.l.b16 %v511
  %v585 = vunpack.c.h.b16 %v511
  %v586 = vunpack.c.l.b16 %v512
  %v587 = vunpack.c.h.b16 %v512
  %v588 = vunpack.c.l.b16 %v513
  %v589 = vunpack.c.h.b16 %v513
  %v590 = vunpack.c.l.b16 %v514
  %v591 = vunpack.c.h.b16 %v514
  %v592 = vunpack.c.l.b16 %v515
  %v593 = vunpack.c.h.b16 %v515
  %v594 = vunpack.c.l.b16 %v516
  %v595 = vunpack.c.h.b16 %v516
  %v596 = vunpack.c.l.b16 %v517
  %v597 = vunpack.c.h.b16 %v517
  %v598 = vunpack.c.l.b16 %v518
  %v599 = vunpack.c.h.b16 %v518
  %v600 = vunpack.c.l.b16 %v519
  %v601 = vunpack.c.h.b16 %v519
  %v602 = vunpack.c.l.b16 %v520
  %v603 = vunpack.c.h.b16 %v520
  %v604 = vunpack.c.l.b16 %v521
  %v605 = vunpack.c.h.b16 %v521
  %v606 = vunpack.c.l.b16 %v522
  %v607 = vunpack.c.h.b16 %v522
  %v608 = vunpack.c.l.b16 %v523
  %v609 = vunpack.c.h.b16 %v523
  %v610 = vunpack.c.l.b16 %v524
  %v611 = vunpack.c.h.b16 %v524
  %v612 = vunpack.c.l.b16 %v525
  %v613 = vunpack.c.h.b16 %v525
  %v614 = vunpack.c.l.b16 %v526
  %v615 = vunpack.c.h.b16 %v526
  %v616 = vunpack.c.l.b16 %v527
  %v617 = vunpack.c.h.b16 %v527
  %v618 = vunpack.c.l.b16 %v528
  %v619 = vunpack.c.h.b16 %v528
  %v620 = vunpack.c.l.b16 %v529
  %v621 = vunpack.c.h.b16 %v529
  %v622 = vunpack.c.l.b16 %v530
  %v623 = vunpack.c.h.b16 %v530
  %v624 = vunpack.c.l.b16 %v531
  %v625 = vunpack.c.h.b16 %v531
  %v626 = vunpack.c.l.b16 %v532
  %v627 = vunpack.c.h.b16 %v532
  %v628 = vunpack.c.l.b16 %v533
  %v629 = vunpack.c.h.b16 %v533
  %v630 = vpack.c.b16 %v574, %v566
  %v631 = vpack.c.b16 %v575, %v567
  %v632 = vpack.c.b16 %v576, %v568
  %v633 = vpack.c.b16 %v577, %v569
  %v634 = vpack.c.b16 %v578, %v570
  %v635 = vpack.c.b16 %v579, %v571
  %v636 = vpack.c.b16 %v580, %v572
  %v637 = vpack.c.b16 %v581, %v573
  %v638 = vpack.c.b16 %v590, %v582
  %v639 = vpack.c.b16 %v591, %v583
  %v640 = vpack.c.b16 %v592, %v584
  %v641 = vpack.c.b16 %v593, %v585
  %v642 = vpack.c.b16 %v594, %v586
  %v643 = vpack.c.b16 %v595, %v587
  %v644 = vpack.c.b16 %v596, %v588
  %v645 = vpack.c.b16 %v597, %v589
  %v646 = vpack.c.b16 %v606, %v598
  %v647 = vpack.c.b16 %v607, %v599
  %v648 = vpack.c.b16 %v608, %v600
  %v649 = vpack.c.b16 %v609, %v601
  %v650 = vpack.c.b16 %v610, %v602
  %v651 = vpack.c.b16 %v611, %v603
  %v652 = vpack.c.b16 %v612, %v604
  %v653 = vpack.c.b16 %v613, %v605
  %v654 = vpack.c.b16 %v622, %v614
  %v655 = vpack.c.b16 %v623, %v615
  %v656 = vpack.c.b16 %v624, %v616
  %v657 = vpack.c.b16 %v625, %v617
  %v658 = vpack.c.b16 %v626, %v618
  %v659 = vpack.c.b16 %v627, %v619
  %v660 = vpack.c.b16 %v628, %v620
  %v661 = vpack.c.b16 %v629, %v621
  %vm694 = vcmask 523264
  %v696 = vsel %vm694, %v501, 0
  %698 = vmatprep.subr.bf16.mxu0 0
  %699 = vmatpush1.bf16.msra.mxu0 0
  %700 = vmatprep.subr.bf16.mxu0 0
  %701 = vmatpush1.bf16.msra.mxu0 0
  %702 = vmatprep.subr.bf16.mxu0 0
  %703 = vmatpush1.bf16.msra.mxu0 0
  %704 = vmatprep.subr.bf16.mxu0 0
  %705 = vmatpush1.bf16.msra.mxu0 0
  %706 = vmatprep.subr.bf16.mxu0 %v655
  %707 = vmatpush1.bf16.msra.mxu0 %v654
  %708 = vmatprep.subr.bf16.mxu0 %v647
  %709 = vmatpush1.bf16.msra.mxu0 %v646
  %710 = vmatprep.subr.bf16.mxu0 %v639
  %711 = vmatpush1.bf16.msra.mxu0 %v638
  %712 = vmatprep.subr.bf16.mxu0 %v631
  %713 = vmatpush1.bf16.msra.mxu0 %v630
  %714 = vmatprep.subr.bf16.mxu0 0
  %715 = vmatpush2.bf16.msra.mxu0 0
  %716 = vmatprep.subr.bf16.mxu0 0
  %717 = vmatpush2.bf16.msra.mxu0 0
  %718 = vmatprep.subr.bf16.mxu0 0
  %719 = vmatpush2.bf16.msra.mxu0 0
  %720 = vmatprep.subr.bf16.mxu0 0
  %721 = vmatpush2.bf16.msra.mxu0 0
  %722 = vmatprep.subr.bf16.mxu0 0
  %723 = vmatpush2.bf16.msra.mxu0 0
  %724 = vmatprep.subr.bf16.mxu0 0
  %725 = vmatpush2.bf16.msra.mxu0 0
  %726 = vmatprep.subr.bf16.mxu0 0
  %727 = vmatpush2.bf16.msra.mxu0 0
  %728 = vmatprep.subr.bf16.mxu0 0
  %729 = vmatpush2.bf16.msra.mxu0 0
  %730 = vmatprep.mubr.bf16.mxu0 0
  %731 = vmatmul.mubr.bf16.gmra.mxu0 %v696
  %v732 = vpop.f32.mrf.mxu0
  %v733 = vadd.f32 0.0, %v732
  %v734 = vpop.f32.mrf.mxu0
  %v735 = vadd.f32 0.0, %v734
  %v736 = vpop.f32.mrf.mxu0
  %v737 = vpop.f32.mrf.mxu0
  %738 = vdwg.mxu0
  %739 = vmatprep.subr.bf16.mxu0 0
  %740 = vmatpush1.bf16.msra.mxu0 0
  %741 = vmatprep.subr.bf16.mxu0 0
  %742 = vmatpush1.bf16.msra.mxu0 0
  %743 = vmatprep.subr.bf16.mxu0 0
  %744 = vmatpush1.bf16.msra.mxu0 0
  %745 = vmatprep.subr.bf16.mxu0 0
  %746 = vmatpush1.bf16.msra.mxu0 0
  %747 = vmatprep.subr.bf16.mxu0 %v657
  %748 = vmatpush1.bf16.msra.mxu0 %v656
  %749 = vmatprep.subr.bf16.mxu0 %v649
  %750 = vmatpush1.bf16.msra.mxu0 %v648
  %751 = vmatprep.subr.bf16.mxu0 %v641
  %752 = vmatpush1.bf16.msra.mxu0 %v640
  %753 = vmatprep.subr.bf16.mxu0 %v633
  %754 = vmatpush1.bf16.msra.mxu0 %v632
  %755 = vmatprep.subr.bf16.mxu0 0
  %756 = vmatpush2.bf16.msra.mxu0 0
  %757 = vmatprep.subr.bf16.mxu0 0
  %758 = vmatpush2.bf16.msra.mxu0 0
  %759 = vmatprep.subr.bf16.mxu0 0
  %760 = vmatpush2.bf16.msra.mxu0 0
  %761 = vmatprep.subr.bf16.mxu0 0
  %762 = vmatpush2.bf16.msra.mxu0 0
  %763 = vmatprep.subr.bf16.mxu0 0
  %764 = vmatpush2.bf16.msra.mxu0 0
  %765 = vmatprep.subr.bf16.mxu0 0
  %766 = vmatpush2.bf16.msra.mxu0 0
  %767 = vmatprep.subr.bf16.mxu0 0
  %768 = vmatpush2.bf16.msra.mxu0 0
  %769 = vmatprep.subr.bf16.mxu0 0
  %770 = vmatpush2.bf16.msra.mxu0 0
  %771 = vmatprep.mubr.bf16.mxu0 0
  %772 = vmatmul.mubr.bf16.gmra.mxu0 %v696
  %v773 = vpop.f32.mrf.mxu0
  %v774 = vadd.f32 0.0, %v773
  %v775 = vpop.f32.mrf.mxu0
  %v776 = vadd.f32 0.0, %v775
  %v777 = vpop.f32.mrf.mxu0
  %v778 = vpop.f32.mrf.mxu0
  %779 = vdwg.mxu0
  %780 = vmatprep.subr.bf16.mxu0 0
  %781 = vmatpush1.bf16.msra.mxu0 0
  %782 = vmatprep.subr.bf16.mxu0 0
  %783 = vmatpush1.bf16.msra.mxu0 0
  %784 = vmatprep.subr.bf16.mxu0 0
  %785 = vmatpush1.bf16.msra.mxu0 0
  %786 = vmatprep.subr.bf16.mxu0 0
  %787 = vmatpush1.bf16.msra.mxu0 0
  %788 = vmatprep.subr.bf16.mxu0 %v659
  %789 = vmatpush1.bf16.msra.mxu0 %v658
  %790 = vmatprep.subr.bf16.mxu0 %v651
  %791 = vmatpush1.bf16.msra.mxu0 %v650
  %792 = vmatprep.subr.bf16.mxu0 %v643
  %793 = vmatpush1.bf16.msra.mxu0 %v642
  %794 = vmatprep.subr.bf16.mxu0 %v635
  %795 = vmatpush1.bf16.msra.mxu0 %v634
  %796 = vmatprep.subr.bf16.mxu0 0
  %797 = vmatpush2.bf16.msra.mxu0 0
  %798 = vmatprep.subr.bf16.mxu0 0
  %799 = vmatpush2.bf16.msra.mxu0 0
  %800 = vmatprep.subr.bf16.mxu0 0
  %801 = vmatpush2.bf16.msra.mxu0 0
  %802 = vmatprep.subr.bf16.mxu0 0
  %803 = vmatpush2.bf16.msra.mxu0 0
  %804 = vmatprep.subr.bf16.mxu0 0
  %805 = vmatpush2.bf16.msra.mxu0 0
  %806 = vmatprep.subr.bf16.mxu0 0
  %807 = vmatpush2.bf16.msra.mxu0 0
  %808 = vmatprep.subr.bf16.mxu0 0
  %809 = vmatpush2.bf16.msra.mxu0 0
  %810 = vmatprep.subr.bf16.mxu0 0
  %811 = vmatpush2.bf16.msra.mxu0 0
  %812 = vmatprep.mubr.bf16.mxu0 0
  %813 = vmatmul.mubr.bf16.gmra.mxu0 %v696
  %v814 = vpop.f32.mrf.mxu0
  %v815 = vadd.f32 0.0, %v814
  %v816 = vpop.f32.mrf.mxu0
  %v817 = vadd.f32 0.0, %v816
  %v818 = vpop.f32.mrf.mxu0
  %v819 = vpop.f32.mrf.mxu0
  %820 = vdwg.mxu0
  %821 = vmatprep.subr.bf16.mxu0 0
  %822 = vmatpush1.bf16.msra.mxu0 0
  %823 = vmatprep.subr.bf16.mxu0 0
  %824 = vmatpush1.bf16.msra.mxu0 0
  %825 = vmatprep.subr.bf16.mxu0 0
  %826 = vmatpush1.bf16.msra.mxu0 0
  %827 = vmatprep.subr.bf16.mxu0 0
  %828 = vmatpush1.bf16.msra.mxu0 0
  %829 = vmatprep.subr.bf16.mxu0 %v661
  %830 = vmatpush1.bf16.msra.mxu0 %v660
  %831 = vmatprep.subr.bf16.mxu0 %v653
  %832 = vmatpush1.bf16.msra.mxu0 %v652
  %833 = vmatprep.subr.bf16.mxu0 %v645
  %834 = vmatpush1.bf16.msra.mxu0 %v644
  %835 = vmatprep.subr.bf16.mxu0 %v637
  %836 = vmatpush1.bf16.msra.mxu0 %v636
  %837 = vmatprep.subr.bf16.mxu0 0
  %838 = vmatpush2.bf16.msra.mxu0 0
  %839 = vmatprep.subr.bf16.mxu0 0
  %840 = vmatpush2.bf16.msra.mxu0 0
  %841 = vmatprep.subr.bf16.mxu0 0
  %842 = vmatpush2.bf16.msra.mxu0 0
  %843 = vmatprep.subr.bf16.mxu0 0
  %844 = vmatpush2.bf16.msra.mxu0 0
  %845 = vmatprep.subr.bf16.mxu0 0
  %846 = vmatpush2.bf16.msra.mxu0 0
  %847 = vmatprep.subr.bf16.mxu0 0
  %848 = vmatpush2.bf16.msra.mxu0 0
  %849 = vmatprep.subr.bf16.mxu0 0
  %850 = vmatpush2.bf16.msra.mxu0 0
  %851 = vmatprep.subr.bf16.mxu0 0
  %852 = vmatpush2.bf16.msra.mxu0 0
  %853 = vmatprep.mubr.bf16.mxu0 0
  %854 = vmatmul.mubr.bf16.gmra.mxu0 %v696
  %v855 = vpop.f32.mrf.mxu0
  %v856 = vadd.f32 0.0, %v855
  %v857 = vpop.f32.mrf.mxu0
  %v858 = vadd.f32 0.0, %v857
  %v859 = vpop.f32.mrf.mxu0
  %v860 = vpop.f32.mrf.mxu0
  %861 = vdwg.mxu0
  %v862 = vxor.u32 %v733, 2147483648
  %v863 = vxor.u32 %v735, 2147483648
  %v864 = vxor.u32 %v774, 2147483648
  %v865 = vxor.u32 %v776, 2147483648
  %v866 = vxor.u32 %v815, 2147483648
  %v867 = vxor.u32 %v817, 2147483648
  %v868 = vxor.u32 %v856, 2147483648
  %v869 = vxor.u32 %v858, 2147483648
  %v870 = vmul.f32 %v862, 1.442695
  %v871 = vpow.pop %v870
  %v872 = vmul.f32 %v863, 1.442695
  %v873 = vpow.pop %v872
  %v874 = vmul.f32 %v864, 1.442695
  %v875 = vpow.pop %v874
  %v876 = vmul.f32 %v865, 1.442695
  %v877 = vpow.pop %v876
  %v878 = vmul.f32 %v866, 1.442695
  %v879 = vpow.pop %v878
  %v880 = vmul.f32 %v867, 1.442695
  %v881 = vpow.pop %v880
  %v882 = vmul.f32 %v868, 1.442695
  %v883 = vpow.pop %v882
  %v884 = vmul.f32 %v869, 1.442695
  %v885 = vpow.pop %v884
  %v886 = vadd.f32 %v871, 1.0
  %v887 = vadd.f32 %v873, 1.0
  %v888 = vadd.f32 %v875, 1.0
  %v889 = vadd.f32 %v877, 1.0
  %v890 = vadd.f32 %v879, 1.0
  %v891 = vadd.f32 %v881, 1.0
  %v892 = vadd.f32 %v883, 1.0
  %v893 = vadd.f32 %v885, 1.0
  %v894 = vrcp.pop %v886
  %v895 = vmul.f32 1.0, %v894
  %v896 = vrcp.pop %v887
  %v897 = vmul.f32 1.0, %v896
  %v898 = vrcp.pop %v888
  %v899 = vmul.f32 1.0, %v898
  %v900 = vrcp.pop %v889
  %v901 = vmul.f32 1.0, %v900
  %v902 = vrcp.pop %v890
  %v903 = vmul.f32 1.0, %v902
  %v904 = vrcp.pop %v891
  %v905 = vmul.f32 1.0, %v904
  %v906 = vrcp.pop %v892
  %v907 = vmul.f32 1.0, %v906
  %v908 = vrcp.pop %v893
  %v909 = vmul.f32 1.0, %v908
  %v918 = vcombine.low %v895, %v897
  %v919 = vcombine.low %v899, %v901
  %v921 = vunpack.c.l.s4 1983009808
  %v922 = vunpack.c.0.s8 %v921
  %v923 = vlaneseq
  %v924 = vshrl.u32 %v923, 7
  %v925 = vsub.s32 %v922, %v924
  %v926 = vrot.slane %v918, %v925
  %v928 = vunpack.c.l.s4 1983009808
  %v929 = vunpack.c.0.s8 %v928
  %v930 = vlaneseq
  %v931 = vshrl.u32 %v930, 7
  %v932 = vsub.s32 %v929, %v931
  %v933 = vrot.slane %v919, %v932
  %v934 = vcombine.low %v926, %v933
  %v935 = vcombine.low %v903, %v905
  %v936 = vcombine.low %v907, %v909
  %v938 = vunpack.c.l.s4 1983009808
  %v939 = vunpack.c.0.s8 %v938
  %v940 = vlaneseq
  %v941 = vshrl.u32 %v940, 7
  %v942 = vsub.s32 %v939, %v941
  %v943 = vrot.slane %v935, %v942
  %v945 = vunpack.c.l.s4 1983009808
  %v946 = vunpack.c.0.s8 %v945
  %v947 = vlaneseq
  %v948 = vshrl.u32 %v947, 7
  %v949 = vsub.s32 %v946, %v948
  %v950 = vrot.slane %v936, %v949
  %v951 = vcombine.low %v943, %v950
  %954 = vst [vmem:[%s6] sm:$0xff] %v934
  %955 = vst [vmem:[%s6 + $0x8] sm:$0xff] %v951
  // Predicated region
  $region26: #{action_value_forward.1} parent=0 // pred_check
    _
  $region27: #{action_value_forward.1} parent=0 // pred_check_branch
    %957 = sbr.rel (0) target = $region29
  $region28: #{action_value_forward.1} parent=0 // pred_region
    _
  $region29: #{action_value_forward.1} parent=0 // pred_fallthru
    _
  // Predicated region
  $region30: #{action_value_forward.1} parent=0 // pred_check
    _
  $region31: #{action_value_forward.1} parent=0 // pred_check_branch
    %959 = sbr.rel (0) target = $region33
  $region32: #{action_value_forward.1} parent=0 // pred_region
    _
  $region33: #{action_value_forward.1} parent=0 // pred_fallthru
    _
  // Predicated region
  $region34: #{action_value_forward.1} parent=0 // pred_check
    _
  $region35: #{action_value_forward.1} parent=0 // pred_check_branch
    %961 = sbr.rel (0) target = $region37
  $region36: #{action_value_forward.1} parent=0 // pred_region
    _
  $region37: #{action_value_forward.1} parent=0 // pred_fallthru
    _
  // Predicated region
  $region38: #{action_value_forward.1} parent=0 // pred_check
    _
  $region39: #{action_value_forward.1} parent=0 // pred_check_branch
    %963 = sbr.rel (0) target = $region41
  $region40: #{action_value_forward.1} parent=0 // pred_region
    _
  $region41: #{action_value_forward.1} parent=0 // pred_fallthru
    _

</llo_original>
